<compile_context>
chip_gen: v5e
topology: v5e:2x2
jax: 0.10.0
libtpu: 0.0.40
codegen_flags: <defaults>
</compile_context>

<pallas_src>
import jax
import jax.numpy as jnp
from jax.experimental import pallas as pl
from jax.experimental.pallas import tpu as pltpu


_LANES = 128
_ACC_ROWS = 8          # small (8,128) f32 vector accumulator
_MAX_BLOCK_ROWS = 4096 # 3 inputs x 2 bufs x 2 MiB = 12 MiB -> safe on v7x too


def _round_up(x, m):
    return ((x + m - 1) // m) * m


def _sublane_granule(dtype):
    # f32 -> 8, bf16/f16 -> 16, int8/fp8 -> 32 (packed dtypes need taller tiles)
    itemsize = int(jnp.dtype(dtype).itemsize)
    return max(8, 32 // max(itemsize, 1))


def _num_core_splits():
    """Use a 2-way 'parallel' leading axis only where the device has 2 TCs."""
    try:
        kind = jax.devices()[0].device_kind.lower()
    except Exception:
        return 1
    if any(s in kind for s in ("v5 lite", "v5e", "v5litepod", "v6 lite", "v6e")):
        return 1  # single TensorCore per chip: a core split is pure overhead
    if "7" in kind or "v4" in kind or "v5p" in kind:
        return 2  # two TensorCores per device: shard the reduction
    return 1


def _aux_loss_kernel(w_ref, rows_ref, x0_ref, x1_ref, t_ref, out_ref, acc_ref):
    """Grid: (core_split [parallel], row_tiles [arbitrary / reduction]).

    Per split c the kernel produces an (8,128) partial slab such that
        sum(out[c]) = sum_over_split( w0*(x0-t)^2 + w1*|x1-t| )
    The host applies the single 1/N 'mean' scaling and the final sum.
    """
    c = pl.program_id(0)
    i = pl.program_id(1)
    steps = pl.num_programs(1)
    block_rows = x0_ref.shape[0]

    # Upcast per tile (inputs may be bf16); math + accumulation in f32 (VPU).
    x0 = x0_ref[...].astype(jnp.float32)
    x1 = x1_ref[...].astype(jnp.float32)
    t = t_ref[...].astype(jnp.float32)

    w0 = w_ref[0]
    w1 = w_ref[1]
    d0 = x0 - t
    d1 = x1 - t
    contrib = w0 * (d0 * d0) + w1 * jnp.abs(d1)  # fused weighted elementwise

    def _accumulate(v):
        # Fold (block_rows,128) -> (8,128) before accumulating: per-step
        # accumulator read+write is ~8 KiB regardless of tile height.
        folded = jnp.sum(v.reshape(block_rows // _ACC_ROWS, _ACC_ROWS, _LANES),
                         axis=0)

        @pl.when(i == 0)
        def _():
            acc_ref[...] = folded          # first step: no zero-fill + add

        @pl.when(i > 0)
        def _():
            acc_ref[...] += folded

    # Ragged tail handled in-kernel.  Rows at/after rows_ref[0] are either a
    # partial block's undefined VMEM region or a clamped out-of-range block;
    # they must be masked.  Full blocks skip the mask entirely.
    row0 = (c * steps + i) * block_rows
    rows_total = rows_ref[0]
    is_full = (row0 + block_rows) <= rows_total

    @pl.when(is_full)
    def _():
        _accumulate(contrib)

    @pl.when(jnp.logical_not(is_full))
    def _():
        row_ids = row0 + jax.lax.broadcasted_iota(
            jnp.int32, (block_rows, _LANES), 0)
        _accumulate(jnp.where(row_ids < rows_total, contrib, 0.0))

    @pl.when(i == steps - 1)
    def _():
        out_ref[...] = acc_ref[...]


def auxiliary_loss_pallas(inputs, target, weight=None, *,
                          block_rows=2048, input_buffer_count=None):
    """inputs: list of 2 arrays; target broadcast to both (PyTorch semantics).

    Returns scalar float32 = weight[0]*MSE(inputs[0], target)
                           + weight[1]*L1 (inputs[1], target)
    """
    assert isinstance(inputs, (list, tuple)) and len(inputs) == 2
    x0, x1 = inputs
    assert x0.shape == x1.shape == target.shape
    if weight is None:
        weight = (0.5, 0.5)  # AuxiliaryLoss default: 1/len(losses)
    assert len(weight) == 2

    n_elem = int(x0.size)
    assert n_elem > 0
    rows = pl.cdiv(n_elem, _LANES)

    def _prep(a):
        flat = a.reshape(-1)
        rem = n_elem % _LANES
        if rem:
            # Only the non-128-aligned case pays a (tiny) pad copy; the common
            # aligned case streams the original buffers with zero extra copies.
            # x and t are padded identically -> pad lanes contribute exactly 0.
            flat = jnp.pad(flat, (0, _LANES - rem))
        return flat.reshape(rows, _LANES)  # native dtype; upcast in-kernel

    x0f, x1f, tf = _prep(x0), _prep(x1), _prep(target)

    num_splits = _num_core_splits()
    granule = max(_sublane_granule(a.dtype) for a in (x0f, x1f, tf))
    rows_per_split = pl.cdiv(rows, num_splits)

    req = _round_up(max(granule, min(block_rows, _MAX_BLOCK_ROWS)), granule)
    block_rows_eff = min(req, _round_up(rows_per_split, granule))
    steps = pl.cdiv(rows_per_split, block_rows_eff)

    w_smem = jnp.asarray(weight, dtype=jnp.float32)   # [w0, w1]
    rows_smem = jnp.array([rows], dtype=jnp.int32)    # valid 128-lane rows

    tile_kwargs = {}
    if input_buffer_count is not None and input_buffer_count != 2:
        tile_kwargs["pipeline_mode"] = pl.Buffered(input_buffer_count)
    tile = pl.BlockSpec((block_rows_eff, _LANES),
                        lambda c, i: (c * steps + i, 0), **tile_kwargs)

    partials = pl.pallas_call(
        _aux_loss_kernel,
        out_shape=jax.ShapeDtypeStruct((num_splits * _ACC_ROWS, _LANES),
                                       jnp.float32),
        grid_spec=pltpu.PrefetchScalarGridSpec(
            num_scalar_prefetch=0,
            grid=(num_splits, steps),
            in_specs=[
                pl.BlockSpec(memory_space=pltpu.SMEM),   # [w0, w1]
                pl.BlockSpec(memory_space=pltpu.SMEM),   # [rows]
                tile,   # x0
                tile,   # x1
                tile,   # target
            ],
            out_specs=pl.BlockSpec((_ACC_ROWS, _LANES), lambda c, i: (c, 0)),
            scratch_shapes=[pltpu.VMEM((_ACC_ROWS, _LANES), jnp.float32)],
        ),
        compiler_params=pltpu.CompilerParams(
            dimension_semantics=("parallel", "arbitrary"),
        ),
    )(w_smem, rows_smem, x0f, x1f, tf)

    # Tiny (num_splits*8,128) partial slab; final reduce + 'mean' scale outside.
    return jnp.sum(partials) * (1.0 / n_elem)


if __name__ == "__main__":
    key = jax.random.PRNGKey(0)
    k0, k1, kt = jax.random.split(key, 3)

    weight = (0.5, 0.5)  # default AuxiliaryLoss weight = 1/len(losses)

    # Test 1: NCHW f32, 128-aligned element count (no host-side padding/copy).
    B, C, H, W = 2, 4, 16, 16
    x0 = jax.random.normal(k0, (B, C, H, W), dtype=jnp.float32)
    x1 = jax.random.normal(k1, (B, C, H, W), dtype=jnp.float32)
    t = jax.random.normal(kt, (B, C, H, W), dtype=jnp.float32)
    loss = jax.block_until_ready(auxiliary_loss_pallas([x0, x1], t, weight))
    ref = (weight[0] * jnp.mean((x0 - t) ** 2)
           + weight[1] * jnp.mean(jnp.abs(x1 - t)))
    assert jnp.allclose(loss, ref, rtol=1e-5, atol=1e-6), (loss, ref)

    # Test 2: odd element count (ragged tail -> in-kernel masking path).
    B2, C2, H2, W2 = 2, 3, 7, 5
    y0 = jax.random.normal(k0, (B2, C2, H2, W2), dtype=jnp.float32)
    y1 = jax.random.normal(k1, (B2, C2, H2, W2), dtype=jnp.float32)
    t2 = jax.random.normal(kt, (B2, C2, H2, W2), dtype=jnp.float32)
    loss2 = jax.block_until_ready(auxiliary_loss_pallas([y0, y1], t2, weight))
    ref2 = (weight[0] * jnp.mean((y0 - t2) ** 2)
            + weight[1] * jnp.mean(jnp.abs(y1 - t2)))
    assert jnp.allclose(loss2, ref2, rtol=1e-5, atol=1e-6), (loss2, ref2)

    # Test 3: bf16 inputs (exercises the 16-row sublane granule + in-kernel upcast).
    z0 = jax.random.normal(k0, (B, C, H, W), dtype=jnp.bfloat16)
    z1 = jax.random.normal(k1, (B, C, H, W), dtype=jnp.bfloat16)
    t3 = jax.random.normal(kt, (B, C, H, W), dtype=jnp.bfloat16)
    loss3 = jax.block_until_ready(auxiliary_loss_pallas([z0, z1], t3, weight))
    z0f, z1f, t3f = (a.astype(jnp.float32) for a in (z0, z1, t3))
    ref3 = (weight[0] * jnp.mean((z0f - t3f) ** 2)
            + weight[1] * jnp.mean(jnp.abs(z1f - t3f)))
    assert jnp.allclose(loss3, ref3, rtol=1e-5, atol=1e-6), (loss3, ref3)

    print("KERNEL_OK")
</pallas_src>

<mosaic_0001>
module attributes {stable_mosaic.version = 11 : i64} {
  func.func @_aux_loss_kernel(%arg0: i32, %arg1: i32, %arg2: memref<2xf32, #tpu.memory_space<smem>>, %arg3: memref<1xi32, #tpu.memory_space<smem>>, %arg4: memref<16x128xf32, #tpu.memory_space<vmem>>, %arg5: memref<16x128xf32, #tpu.memory_space<vmem>>, %arg6: memref<16x128xf32, #tpu.memory_space<vmem>>, %arg7: memref<8x128xf32, #tpu.memory_space<vmem>>, %arg8: memref<8x128xf32, #tpu.memory_space<vmem>>) attributes {dimension_semantics = [#tpu.dimension_semantics<parallel>, #tpu.dimension_semantics<arbitrary>], iteration_bounds = array<i64: 1, 1>, scalar_prefetch = 0 : i64, scratch_operands = 1 : i64, tpu.core_type = #tpu.core_type<tc>, window_params = [{transform_indices = @transform_0, window_bounds = array<i64: 2>}, {transform_indices = @transform_1, window_bounds = array<i64: 1>}, {transform_indices = @transform_2, window_bounds = array<i64: 16, 128>}, {transform_indices = @transform_3, window_bounds = array<i64: 16, 128>}, {transform_indices = @transform_4, window_bounds = array<i64: 16, 128>}, {transform_indices = @transform_5, window_bounds = array<i64: 8, 128>}]} {
    %c0 = arith.constant 0 : index
    %c0_0 = arith.constant 0 : index
    %0 = vector.load %arg4[%c0, %c0_0] : memref<16x128xf32, #tpu.memory_space<vmem>>, vector<16x128xf32>
    %c0_1 = arith.constant 0 : index
    %c0_2 = arith.constant 0 : index
    %1 = vector.load %arg5[%c0_1, %c0_2] : memref<16x128xf32, #tpu.memory_space<vmem>>, vector<16x128xf32>
    %c0_3 = arith.constant 0 : index
    %c0_4 = arith.constant 0 : index
    %2 = vector.load %arg6[%c0_3, %c0_4] : memref<16x128xf32, #tpu.memory_space<vmem>>, vector<16x128xf32>
    %c0_5 = arith.constant 0 : index
    %3 = memref.load %arg2[%c0_5] : memref<2xf32, #tpu.memory_space<smem>>
    %c1 = arith.constant 1 : index
    %4 = memref.load %arg2[%c1] : memref<2xf32, #tpu.memory_space<smem>>
    %5 = arith.subf %0, %2 : vector<16x128xf32>
    %6 = arith.subf %1, %2 : vector<16x128xf32>
    %7 = arith.mulf %5, %5 : vector<16x128xf32>
    %8 = vector.broadcast %3 : f32 to vector<16x128xf32>
    %9 = arith.mulf %8, %7 : vector<16x128xf32>
    %10 = math.absf %6 : vector<16x128xf32>
    %11 = vector.broadcast %4 : f32 to vector<16x128xf32>
    %12 = arith.mulf %11, %10 : vector<16x128xf32>
    %13 = arith.addf %9, %12 : vector<16x128xf32>
    %c1_i32 = arith.constant 1 : i32
    %14 = arith.muli %arg0, %c1_i32 : i32
    %15 = arith.addi %14, %arg1 : i32
    %c16_i32 = arith.constant 16 : i32
    %16 = arith.muli %15, %c16_i32 : i32
    %c0_6 = arith.constant 0 : index
    %17 = memref.load %arg3[%c0_6] : memref<1xi32, #tpu.memory_space<smem>>
    %c16_i32_7 = arith.constant 16 : i32
    %18 = arith.addi %16, %c16_i32_7 : i32
    %19 = arith.cmpi sle, %18, %17 : i32
    %20 = arith.extui %19 : i1 to i32
    %c0_i32 = arith.constant 0 : i32
    %21 = arith.cmpi ne, %20, %c0_i32 : i32
    scf.if %21 {
      %28 = vector.shape_cast %13 : vector<16x128xf32> to vector<2x8x128xf32>
      %cst = arith.constant dense<0.000000e+00> : vector<8x128xf32>
      %29 = vector.multi_reduction <add>, %28, %cst [0] : vector<2x8x128xf32> to vector<8x128xf32>
      %c0_i32_11 = arith.constant 0 : i32
      %30 = arith.cmpi eq, %arg1, %c0_i32_11 : i32
      %31 = arith.extui %30 : i1 to i32
      %c0_i32_12 = arith.constant 0 : i32
      %32 = arith.cmpi ne, %31, %c0_i32_12 : i32
      scf.if %32 {
        %c0_15 = arith.constant 0 : index
        %c0_16 = arith.constant 0 : index
        %36 = vector.load %arg8[%c0_15, %c0_16] : memref<8x128xf32, #tpu.memory_space<vmem>>, vector<8x128xf32>
        tpu.vector_store %arg8[%c0_15, %c0_16], %29 {strides = array<i32>} : memref<8x128xf32, #tpu.memory_space<vmem>>, vector<8x128xf32>,
      } else {
      }
      %c0_i32_13 = arith.constant 0 : i32
      %33 = arith.cmpi sgt, %arg1, %c0_i32_13 : i32
      %34 = arith.extui %33 : i1 to i32
      %c0_i32_14 = arith.constant 0 : i32
      %35 = arith.cmpi ne, %34, %c0_i32_14 : i32
      scf.if %35 {
        %c0_15 = arith.constant 0 : index
        %c0_16 = arith.constant 0 : index
        %36 = vector.load %arg8[%c0_15, %c0_16] : memref<8x128xf32, #tpu.memory_space<vmem>>, vector<8x128xf32>
        %37 = arith.addf %36, %29 : vector<8x128xf32>
        %c0_17 = arith.constant 0 : index
        %c0_18 = arith.constant 0 : index
        %38 = vector.load %arg8[%c0_17, %c0_18] : memref<8x128xf32, #tpu.memory_space<vmem>>, vector<8x128xf32>
        tpu.vector_store %arg8[%c0_17, %c0_18], %37 {strides = array<i32>} : memref<8x128xf32, #tpu.memory_space<vmem>>, vector<8x128xf32>,
      } else {
      }
    } else {
    }
    %true = arith.constant true
    %22 = arith.xori %19, %true : i1
    %23 = arith.extui %22 : i1 to i32
    %c0_i32_8 = arith.constant 0 : i32
    %24 = arith.cmpi ne, %23, %c0_i32_8 : i32
    scf.if %24 {
      %28 = tpu.iota {dimensions = array<i32: 0>} : vector<16x128xi32>
      %29 = vector.broadcast %16 : i32 to vector<16x128xi32>
      %30 = arith.addi %29, %28 : vector<16x128xi32>
      %31 = vector.broadcast %17 : i32 to vector<16x128xi32>
      %32 = arith.cmpi slt, %30, %31 : vector<16x128xi32>
      %cst = arith.constant 0.000000e+00 : f32
      %33 = vector.broadcast %cst : f32 to vector<16x128xf32>
      %34 = arith.select %32, %13, %33 : vector<16x128xi1>, vector<16x128xf32>
      %35 = vector.shape_cast %34 : vector<16x128xf32> to vector<2x8x128xf32>
      %cst_11 = arith.constant dense<0.000000e+00> : vector<8x128xf32>
      %36 = vector.multi_reduction <add>, %35, %cst_11 [0] : vector<2x8x128xf32> to vector<8x128xf32>
      %c0_i32_12 = arith.constant 0 : i32
      %37 = arith.cmpi eq, %arg1, %c0_i32_12 : i32
      %38 = arith.extui %37 : i1 to i32
      %c0_i32_13 = arith.constant 0 : i32
      %39 = arith.cmpi ne, %38, %c0_i32_13 : i32
      scf.if %39 {
        %c0_16 = arith.constant 0 : index
        %c0_17 = arith.constant 0 : index
        %43 = vector.load %arg8[%c0_16, %c0_17] : memref<8x128xf32, #tpu.memory_space<vmem>>, vector<8x128xf32>
        tpu.vector_store %arg8[%c0_16, %c0_17], %36 {strides = array<i32>} : memref<8x128xf32, #tpu.memory_space<vmem>>, vector<8x128xf32>,
      } else {
      }
      %c0_i32_14 = arith.constant 0 : i32
      %40 = arith.cmpi sgt, %arg1, %c0_i32_14 : i32
      %41 = arith.extui %40 : i1 to i32
      %c0_i32_15 = arith.constant 0 : i32
      %42 = arith.cmpi ne, %41, %c0_i32_15 : i32
      scf.if %42 {
        %c0_16 = arith.constant 0 : index
        %c0_17 = arith.constant 0 : index
        %43 = vector.load %arg8[%c0_16, %c0_17] : memref<8x128xf32, #tpu.memory_space<vmem>>, vector<8x128xf32>
        %44 = arith.addf %43, %36 : vector<8x128xf32>
        %c0_18 = arith.constant 0 : index
        %c0_19 = arith.constant 0 : index
        %45 = vector.load %arg8[%c0_18, %c0_19] : memref<8x128xf32, #tpu.memory_space<vmem>>, vector<8x128xf32>
        tpu.vector_store %arg8[%c0_18, %c0_19], %44 {strides = array<i32>} : memref<8x128xf32, #tpu.memory_space<vmem>>, vector<8x128xf32>,
      } else {
      }
    } else {
    }
    %c0_i32_9 = arith.constant 0 : i32
    %25 = arith.cmpi eq, %arg1, %c0_i32_9 : i32
    %26 = arith.extui %25 : i1 to i32
    %c0_i32_10 = arith.constant 0 : i32
    %27 = arith.cmpi ne, %26, %c0_i32_10 : i32
    scf.if %27 {
      %c0_11 = arith.constant 0 : index
      %c0_12 = arith.constant 0 : index
      %28 = vector.load %arg8[%c0_11, %c0_12] : memref<8x128xf32, #tpu.memory_space<vmem>>, vector<8x128xf32>
      %c0_13 = arith.constant 0 : index
      %c0_14 = arith.constant 0 : index
      %29 = vector.load %arg7[%c0_13, %c0_14] : memref<8x128xf32, #tpu.memory_space<vmem>>, vector<8x128xf32>
      tpu.vector_store %arg7[%c0_13, %c0_14], %28 {strides = array<i32>} : memref<8x128xf32, #tpu.memory_space<vmem>>, vector<8x128xf32>,
    } else {
    }
    return
  }
  func.func @transform_0(%arg0: i32, %arg1: i32) -> i32 {
    %c0_i32 = arith.constant 0 : i32
    %c0_i32_0 = arith.constant 0 : i32
    return %c0_i32 : i32
  }
  func.func @transform_1(%arg0: i32, %arg1: i32) -> i32 {
    %c0_i32 = arith.constant 0 : i32
    %c0_i32_0 = arith.constant 0 : i32
    return %c0_i32 : i32
  }
  func.func @transform_2(%arg0: i32, %arg1: i32) -> (i32, i32) {
    %c1_i32 = arith.constant 1 : i32
    %0 = arith.muli %arg0, %c1_i32 : i32
    %1 = arith.addi %0, %arg1 : i32
    %c0_i32 = arith.constant 0 : i32
    %c0_i32_0 = arith.constant 0 : i32
    return %1, %c0_i32 : i32, i32
  }
  func.func @transform_3(%arg0: i32, %arg1: i32) -> (i32, i32) {
    %c1_i32 = arith.constant 1 : i32
    %0 = arith.muli %arg0, %c1_i32 : i32
    %1 = arith.addi %0, %arg1 : i32
    %c0_i32 = arith.constant 0 : i32
    %c0_i32_0 = arith.constant 0 : i32
    return %1, %c0_i32 : i32, i32
  }
  func.func @transform_4(%arg0: i32, %arg1: i32) -> (i32, i32) {
    %c1_i32 = arith.constant 1 : i32
    %0 = arith.muli %arg0, %c1_i32 : i32
    %1 = arith.addi %0, %arg1 : i32
    %c0_i32 = arith.constant 0 : i32
    %c0_i32_0 = arith.constant 0 : i32
    return %1, %c0_i32 : i32, i32
  }
  func.func @transform_5(%arg0: i32, %arg1: i32) -> (i32, i32) {
    %c0_i32 = arith.constant 0 : i32
    %c0_i32_0 = arith.constant 0 : i32
    return %arg0, %c0_i32 : i32, i32
  }
}

</mosaic_0001>

<llo_original>
// kernel: tpu_custom_call.1
$region0: #{tpu_custom_call.1}
  #allocation0 [shape = 'u32[]', space=smem, size = 0x4, offset = 0x4, fixed_abs, tag = 'smem constant byte address 0x4 - core index']
  #allocation1 [shape = 'u32[72,128]{1,0:T(1,128)}', space=vmem, size = 0x9000, scoped, tag = 'internal scratch']
  #allocation2 [shape = 'f32[8,128]{1,0:T(8,128)}', space=vmem, size = 0x1000, scoped, tag = 'scratch operand']
  #allocation3 [shape = 's32[1]{0:T(128)S(6)}', space=smem, size = 0x200, scoped, tag = 'scoped memory for tpu_custom_call.1']
  %s0 = inlined_call_operand.vmem [shape: f32[2], index: 0, kind: input, shape index: {}]
  %s1 = inlined_call_operand.<no memory space> [shape: s32[1], index: 1, kind: input, shape index: {}]
  %s2 = inlined_call_operand.hbm [shape: f32[16,128], index: 2, kind: input, shape index: {}]
  %s3 = inlined_call_operand.hbm [shape: f32[16,128], index: 3, kind: input, shape index: {}]
  %s4 = inlined_call_operand.hbm [shape: f32[16,128], index: 4, kind: input, shape index: {}]
  %s5 = inlined_call_operand.hbm [shape: f32[8,128], index: 5, kind: output, shape index: {}]
  %s6 = sld [smem:[#allocation0]]
  $region74: #{tpu_custom_call.1} parent=0
    _
  %s8 = ssub.s32 1, %s6
  %s9 = scalar_select 0, %s8, %s6
  %10 = sst [smem:[#allocation3]] %s1
  $region1: #{tpu_custom_call.1} parent=0
    #allocation4 [shape = 'u8[512]{0}', space=smem, size = 0x200, scoped, tag = 'input window, operand 0, single buffered']
    #allocation5 [shape = 's32[1]{0}', space=sflag, size = 0x4, scoped, tag = 'scoped memory for tpu_custom_call.1']
    #allocation6 [shape = 's32[1]{0}', space=sflag, size = 0x4, scoped, tag = 'scoped memory for tpu_custom_call.1']
    #allocation7 [shape = 's32[1]{0}', space=sflag, size = 0x4, scoped, tag = 'scoped memory for tpu_custom_call.1']
    #allocation8 [shape = 'u8[8192]{0}', space=vmem, size = 0x2000, scoped, tag = 'input window, operand 2, single buffered']
    #allocation9 [shape = 'u8[8192]{0}', space=vmem, size = 0x2000, scoped, tag = 'input window, operand 3, single buffered']
    #allocation10 [shape = 's32[1]{0}', space=sflag, size = 0x4, scoped, tag = 'scoped memory for tpu_custom_call.1']
    #allocation11 [shape = 'u8[8192]{0}', space=vmem, size = 0x2000, scoped, tag = 'input window, operand 4, single buffered']
    #allocation12 [shape = 'u8[4096]{0}', space=vmem, size = 0x1000, scoped, tag = 'output window, operand 0, single buffered']
    %11 = vsyncpa [#allocation7], 0
    %12 = vsyncpa [#allocation5], 0
    %13 = vsyncpa [#allocation10], 0
    %14 = vsyncpa [#allocation6], 0
    // Predicated region
    $region2: #{tpu_custom_call.1} parent=1 // pred_check
      _
    $region3: #{tpu_custom_call.1} parent=1 // pred_check_branch
      %16 = sbr.rel (0) target = $region5
    $region4: #{tpu_custom_call.1} parent=1 // pred_region
      %18 = vsyncadd [#allocation7], 0
      %s20 = sshll.u32 %s0, 4
      %s21 = int_to_ptr.vmem [resolvable:$true] %s20
      %23 = dma.vmem_to_smem %s21, 16, [#allocation4], [#allocation7]
    $region5: #{tpu_custom_call.1} parent=1 // pred_fallthru
      _
    // Predicated region
    $region6: #{tpu_custom_call.1} parent=1 // pred_check
      _
    $region7: #{tpu_custom_call.1} parent=1 // pred_check_branch
      %25 = sbr.rel (0) target = $region9
    $region8: #{tpu_custom_call.1} parent=1 // pred_region
      _
    $region9: #{tpu_custom_call.1} parent=1 // pred_fallthru
      _
    // Predicated region
    $region10: #{tpu_custom_call.1} parent=1 // pred_check
      _
    $region11: #{tpu_custom_call.1} parent=1 // pred_check_branch
      %27 = sbr.rel (0) target = $region13
    $region12: #{tpu_custom_call.1} parent=1 // pred_region
      %s28 = sadd.s32 0, 0
      %s29 = smul.u32 2, %s28
      %31 = vsyncadd [#allocation5], 0
      %s32 = smul.addr %s29, 8
      %s33 = scalar_lea.hbm %s2, %s32
      %s34 = sshll.u32 %s33, 4
      %s35 = int_to_ptr.hbm [resolvable:$true] %s34
      %s36 = sshll.u32 [#allocation8], 4
      %s37 = int_to_ptr.vmem [resolvable:$true] %s36
      %42 = dma.hbm_to_vmem [thread:$0]  %s35, 256, %s37, [#allocation5], 128, 128, 8
    $region13: #{tpu_custom_call.1} parent=1 // pred_fallthru
      _
    // Predicated region
    $region14: #{tpu_custom_call.1} parent=1 // pred_check
      _
    $region15: #{tpu_custom_call.1} parent=1 // pred_check_branch
      %44 = sbr.rel (0) target = $region17
    $region16: #{tpu_custom_call.1} parent=1 // pred_region
      %s45 = sadd.s32 0, 0
      %s46 = smul.u32 2, %s45
      %48 = vsyncadd [#allocation10], 0
      %s49 = smul.addr %s46, 8
      %s50 = scalar_lea.hbm %s3, %s49
      %s51 = sshll.u32 %s50, 4
      %s52 = int_to_ptr.hbm [resolvable:$true] %s51
      %s53 = sshll.u32 [#allocation9], 4
      %s54 = int_to_ptr.vmem [resolvable:$true] %s53
      %59 = dma.hbm_to_vmem [thread:$0]  %s52, 256, %s54, [#allocation10], 128, 128, 8
    $region17: #{tpu_custom_call.1} parent=1 // pred_fallthru
      _
    // Predicated region
    $region18: #{tpu_custom_call.1} parent=1 // pred_check
      _
    $region19: #{tpu_custom_call.1} parent=1 // pred_check_branch
      %61 = sbr.rel (0) target = $region21
    $region20: #{tpu_custom_call.1} parent=1 // pred_region
      %s62 = sadd.s32 0, 0
      %s63 = smul.u32 2, %s62
      %65 = vsyncadd [#allocation10], 0
      %s66 = smul.addr %s63, 8
      %s67 = scalar_lea.hbm %s4, %s66
      %s68 = sshll.u32 %s67, 4
      %s69 = int_to_ptr.hbm [resolvable:$true] %s68
      %s70 = sshll.u32 [#allocation11], 4
      %s71 = int_to_ptr.vmem [resolvable:$true] %s70
      %76 = dma.hbm_to_vmem [thread:$0]  %s69, 256, %s71, [#allocation10], 128, 128, 8
    $region21: #{tpu_custom_call.1} parent=1 // pred_fallthru
      _
    // Predicated region
    $region22: #{tpu_custom_call.1} parent=1 // pred_check
      _
    $region23: #{tpu_custom_call.1} parent=1 // pred_check_branch
      %78 = sbr.rel (0) target = $region25
    $region24: #{tpu_custom_call.1} parent=1 // pred_region
      %80 = dma.done [#allocation7], 16
    $region25: #{tpu_custom_call.1} parent=1 // pred_fallthru
      _
    // Predicated region
    $region26: #{tpu_custom_call.1} parent=1 // pred_check
      _
    $region27: #{tpu_custom_call.1} parent=1 // pred_check_branch
      %82 = sbr.rel (0) target = $region29
    $region28: #{tpu_custom_call.1} parent=1 // pred_region
      %84 = dma.done [#allocation5], 256
    $region29: #{tpu_custom_call.1} parent=1 // pred_fallthru
      _
    // Predicated region
    $region30: #{tpu_custom_call.1} parent=1 // pred_check
      _
    $region31: #{tpu_custom_call.1} parent=1 // pred_check_branch
      %86 = sbr.rel (0) target = $region33
    $region32: #{tpu_custom_call.1} parent=1 // pred_region
      %88 = dma.done [#allocation10], 256
    $region33: #{tpu_custom_call.1} parent=1 // pred_fallthru
      _
    // Predicated region
    $region34: #{tpu_custom_call.1} parent=1 // pred_check
      _
    $region35: #{tpu_custom_call.1} parent=1 // pred_check_branch
      %90 = sbr.rel (0) target = $region37
    $region36: #{tpu_custom_call.1} parent=1 // pred_region
      %92 = dma.done [#allocation10], 256
    $region37: #{tpu_custom_call.1} parent=1 // pred_fallthru
      _
    %93 = sfence
    %s94 = sadd.s32 0, 0
    %s95 = smul.u32 2, %s94
    %s96 = sadd.s32 0, 0
    %s97 = smul.u32 2, %s96
    %s98 = sadd.s32 0, 0
    %s99 = smul.u32 2, %s98
    %v100 = vld [vmem:[#allocation8] sm:$0xff]
    %v101 = vld [vmem:[#allocation8 + $0x8] sm:$0xff]
    %v102 = vld [vmem:[#allocation9] sm:$0xff]
    %v103 = vld [vmem:[#allocation9 + $0x8] sm:$0xff]
    %v104 = vld [vmem:[#allocation11] sm:$0xff]
    %v105 = vld [vmem:[#allocation11 + $0x8] sm:$0xff]
    %s106 = sld [smem:[#allocation4]]
    %s107 = sld [smem:[#allocation4 + $0x1]]
    %v108 = vsub.f32 %v100, %v104
    %v109 = vsub.f32 %v101, %v105
    %v110 = vsub.f32 %v102, %v104
    %v111 = vsub.f32 %v103, %v105
    %v112 = vmul.f32 %v108, %v108
    %v113 = vmul.f32 %v109, %v109
    %v114 = vstv %s106
    %v115 = vmul.f32 %v114, %v112
    %v116 = vmul.f32 %v114, %v113
    %v117 = vand.u32 2147483647, %v110
    %v118 = vand.u32 2147483647, %v111
    %v119 = vstv %s107
    %v120 = vmul.f32 %v119, %v117
    %v121 = vmul.f32 %v119, %v118
    %v122 = vadd.f32 %v115, %v120
    %v123 = vadd.f32 %v116, %v121
    %s124 = sadd.s32 0, 0
    %s125 = smul.u32 %s124, 16
    %s126 = sld [smem:[#allocation3]]
    %s127 = sadd.s32 %s125, 16
    %p128 = scmp.le.s32.totalorder %s127, %s126
    // Predicated region
    $region38: #{tpu_custom_call.1} parent=1 // pred_check
      %p129 = pneg %p128
    $region39: #{tpu_custom_call.1} parent=1 // pred_check_branch
      %131 = sbr.rel (%p129) target = $region41
    $region40: #{tpu_custom_call.1} parent=1 // pred_region
      %v132 = vadd.f32 %v122, %v123
      %p133 = scmp.eq.s32.totalorder 0, 0
      // Predicated region
      $region42: #{tpu_custom_call.1} parent=40 // pred_check
        %p134 = pneg %p133
      $region43: #{tpu_custom_call.1} parent=40 // pred_check_branch
        %136 = sbr.rel (%p134) target = $region45
      $region44: #{tpu_custom_call.1} parent=40 // pred_region
        %137 = vst [vmem:[#allocation2] sm:$0xff] %v132
      $region45: #{tpu_custom_call.1} parent=40 // pred_fallthru
        _
      %p138 = scmp.gt.s32.totalorder 0, 0
      // Predicated region
      $region46: #{tpu_custom_call.1} parent=40 // pred_check
        %p139 = pneg %p138
      $region47: #{tpu_custom_call.1} parent=40 // pred_check_branch
        %141 = sbr.rel (%p139) target = $region49
      $region48: #{tpu_custom_call.1} parent=40 // pred_region
        %v142 = vld [vmem:[#allocation2] sm:$0xff]
        %v143 = vadd.f32 %v142, %v132
        %144 = vst [vmem:[#allocation2] sm:$0xff] %v143
      $region49: #{tpu_custom_call.1} parent=40 // pred_fallthru
        _
    $region41: #{tpu_custom_call.1} parent=1 // pred_fallthru
      _
    %p145 = scmp.gt.s32.totalorder %s127, %s126
    // Predicated region
    $region50: #{tpu_custom_call.1} parent=1 // pred_check
      %p146 = pneg %p145
    $region51: #{tpu_custom_call.1} parent=1 // pred_check_branch
      %148 = sbr.rel (%p146) target = $region53
    $region52: #{tpu_custom_call.1} parent=1 // pred_region
      %v149 = vlaneseq
      %v150 = vshrl.u32 %v149, 7
      %v151 = vadd.s32 %v150, 8
      %v152 = vstv %s125
      %v153 = vadd.s32 %v152, %v150
      %v154 = vadd.s32 %v152, %v151
      %v155 = vstv %s126
      %vm156 = vcmp.lt.s32.totalorder %v153, %v155
      %vm157 = vcmp.lt.s32.totalorder %v154, %v155
      %v158 = vsel %vm156, %v122, 0.0
      %v159 = vsel %vm157, %v123, 0.0
      %v160 = vadd.f32 %v158, %v159
      %p161 = scmp.eq.s32.totalorder 0, 0
      // Predicated region
      $region54: #{tpu_custom_call.1} parent=52 // pred_check
        %p162 = pneg %p161
      $region55: #{tpu_custom_call.1} parent=52 // pred_check_branch
        %164 = sbr.rel (%p162) target = $region57
      $region56: #{tpu_custom_call.1} parent=52 // pred_region
        %165 = vst [vmem:[#allocation2] sm:$0xff] %v160
      $region57: #{tpu_custom_call.1} parent=52 // pred_fallthru
        _
      %p166 = scmp.gt.s32.totalorder 0, 0
      // Predicated region
      $region58: #{tpu_custom_call.1} parent=52 // pred_check
        %p167 = pneg %p166
      $region59: #{tpu_custom_call.1} parent=52 // pred_check_branch
        %169 = sbr.rel (%p167) target = $region61
      $region60: #{tpu_custom_call.1} parent=52 // pred_region
        %v170 = vld [vmem:[#allocation2] sm:$0xff]
        %v171 = vadd.f32 %v170, %v160
        %172 = vst [vmem:[#allocation2] sm:$0xff] %v171
      $region61: #{tpu_custom_call.1} parent=52 // pred_fallthru
        _
    $region53: #{tpu_custom_call.1} parent=1 // pred_fallthru
      _
    %p173 = scmp.eq.s32.totalorder 0, 0
    // Predicated region
    $region62: #{tpu_custom_call.1} parent=1 // pred_check
      %p174 = pneg %p173
    $region63: #{tpu_custom_call.1} parent=1 // pred_check_branch
      %176 = sbr.rel (%p174) target = $region65
    $region64: #{tpu_custom_call.1} parent=1 // pred_region
      %v177 = vld [vmem:[#allocation2] sm:$0xff]
      %178 = vst [vmem:[#allocation12] sm:$0xff] %v177
    $region65: #{tpu_custom_call.1} parent=1 // pred_fallthru
      _
    // Predicated region
    $region66: #{tpu_custom_call.1} parent=1 // pred_check
      _
    $region67: #{tpu_custom_call.1} parent=1 // pred_check_branch
      %180 = sbr.rel (0) target = $region69
    $region68: #{tpu_custom_call.1} parent=1 // pred_region
      %182 = vsyncadd [#allocation6], 0
      %s184 = sshll.u32 [#allocation12], 4
      %s185 = int_to_ptr.vmem [resolvable:$true] %s184
      %s186 = sshll.u32 %s5, 4
      %s187 = int_to_ptr.hbm [resolvable:$true] %s186
      %189 = dma.vmem_to_hbm [thread:$0]  %s185, 128, %s187, [#allocation6]
    $region69: #{tpu_custom_call.1} parent=1 // pred_fallthru
      _
    // Predicated region
    $region70: #{tpu_custom_call.1} parent=1 // pred_check
      _
    $region71: #{tpu_custom_call.1} parent=1 // pred_check_branch
      %191 = sbr.rel (0) target = $region73
    $region72: #{tpu_custom_call.1} parent=1 // pred_region
      %193 = dma.done [#allocation6], 128
    $region73: #{tpu_custom_call.1} parent=1 // pred_fallthru
      _
    %194 = vsyncpa [#allocation5], 1
    %195 = vsyncpa [#allocation10], 1
    %196 = vsyncpa [#allocation6], 1
    %197 = vsyncpa [#allocation7], 1

</llo_original>
